<compile_context>
chip_gen: v5e
topology: v5e:2x2
jax: 0.10.0
libtpu: 0.0.40
codegen_flags: <defaults>
</compile_context>

<pallas_src>
import jax
import jax.numpy as jnp
from jax.experimental import pallas as pl
from jax.experimental.pallas import tpu as pltpu


def _round_up(x, m):
    return ((x + m - 1) // m) * m


def _pick_tm(B, max_tm=256):
    """Batch tile: minimize zero-row padding; prefer smaller TM on ties so the
    grid keeps >=2 steps (v7x 2-TC sharding) and pipelines deeper."""
    b8 = _round_up(B, 8)
    if b8 <= 128:
        return b8
    cands = sorted({128, min(256, max_tm), min(b8, max_tm)})
    return min(cands, key=lambda tm: (_round_up(B, tm) - B, tm))


def _pick_tk(Hp):
    """Hidden-dim reduction tile (Hp is a multiple of 128)."""
    for tk in (512, 256, 128):
        if Hp % tk == 0:
            return tk
    return Hp


def mlp2_kernel(x_ref, w1_ref, b1_ref, w2_ref, b2_ref, o_ref, acc_ref):
    k = pl.program_id(1)

    @pl.when(k == 0)
    def _():
        acc_ref[...] = jnp.zeros_like(acc_ref)

    # h_k = x @ W1[:, k-slice] + b1[k-slice], f32 MXU accumulation, bias
    # folded into the f32 accumulator before any down-cast.
    h = jnp.dot(x_ref[...], w1_ref[...], preferred_element_type=jnp.float32)
    h = h + b1_ref[...].astype(jnp.float32)

    # acc += h_k @ W2[k-slice, :] (feed MXU in the weight dtype; exact for
    # f32 weights, matches two stacked bf16 nn.Linear layers for bf16).
    acc_ref[...] += jnp.dot(h.astype(w2_ref.dtype), w2_ref[...],
                            preferred_element_type=jnp.float32)

    @pl.when(k == pl.num_programs(1) - 1)
    def _():
        out = acc_ref[...] + b2_ref[...].astype(jnp.float32)
        o_ref[...] = out.astype(o_ref.dtype)


def prepare_pliswork_params(w1, b1, w2, b2, *, lane=128, weight_dtype=None):
    """One-time model prep (hoisted out of the forward pass).

    w1, w2 : (H, H) weights in (in, out) layout (= PyTorch nn.Linear weight.T)
    b1, b2 : (H,)  biases
    weight_dtype : e.g. jnp.bfloat16 to halve weight VMEM and ~3x MXU
                   throughput (f32 accumulation kept); None keeps input dtype.
    """
    H = w1.shape[0]
    Hp = _round_up(H, lane)
    wdt = w1.dtype if weight_dtype is None else weight_dtype

    def pad2(a, rows, cols, dt):
        a = a.astype(dt)
        return jnp.pad(a, ((0, rows - a.shape[0]), (0, cols - a.shape[1])))

    return dict(
        H=H, Hp=Hp,
        # unpadded originals for the XLA fast path
        w1=w1, b1=b1, w2=w2, b2=b2,
        # padded (lane-dense) versions for the Pallas path; biases kept in
        # their original dtype (they are accumulated in f32 anyway).
        w1p=pad2(w1, Hp, Hp, wdt),
        w2p=pad2(w2, Hp, Hp, wdt),
        b1p=pad2(jnp.reshape(b1, (1, H)), 1, Hp, b1.dtype),
        b2p=pad2(jnp.reshape(b2, (1, H)), 1, Hp, b2.dtype),
    )


def pliswork_forward(x, params, *, max_tm=256, force_pallas=False):
    """y = (x @ W1 + b1) @ W2 + b2 for x of shape (B, H)."""
    B, H = x.shape
    assert H == params["H"], "hidden size mismatch"
    Hp = params["Hp"]
    dt = x.dtype

    TM = _pick_tm(B, max_tm)
    Bp = _round_up(B, TM)
    TK = _pick_tk(Hp)
    n_k = Hp // TK

    # Fast path: at tiny shapes (single grid step, small Hp) the padded-FLOP
    # overhead + pad/slice HLOs + per-step pipeline cost make pallas_call
    # strictly slower than a fused XLA dot chain.
    if not force_pallas and (Bp // TM) == 1 and n_k == 1 and Hp <= 512:
        h = jnp.dot(x, params["w1"], preferred_element_type=jnp.float32)
        h = h + params["b1"].astype(jnp.float32)
        out = jnp.dot(h.astype(dt), params["w2"],
                      preferred_element_type=jnp.float32)
        out = out + params["b2"].astype(jnp.float32)
        return out.astype(dt)

    w1p, b1p, w2p, b2p = (params["w1p"], params["b1p"],
                          params["w2p"], params["b2p"])
    xp = jnp.pad(x, ((0, Bp - B), (0, Hp - H)))

    act_bytes = x.dtype.itemsize
    w_bytes = w1p.dtype.itemsize

    # VMEM footprint of the pipelined blocks (double-buffered) + accumulator.
    vmem_need = (
        2 * TM * Hp * act_bytes        # x tiles
        + 2 * TM * Hp * act_bytes      # out tiles
        + 2 * Hp * TK * w_bytes        # W1 slabs (streamed along k)
        + 2 * TK * Hp * w_bytes        # W2 slabs (streamed along k)
        + 2 * 8 * TK * b1p.dtype.itemsize
        + 2 * 8 * Hp * b2p.dtype.itemsize
        + TM * Hp * 4                  # f32 accumulator scratch
    )
    vmem_limit = int(min(max(int(vmem_need * 1.5) + (2 << 20), 16 << 20),
                         64 << 20))   # stay under v7x's 64 MiB physical VMEM

    cost = pl.CostEstimate(
        flops=4 * Bp * Hp * Hp,        # two (Bp,Hp)x(Hp,Hp) matmuls
        transcendentals=0,
        bytes_accessed=(xp.size * act_bytes
                        + (w1p.size + w2p.size) * w_bytes
                        + b1p.size * b1p.dtype.itemsize
                        + b2p.size * b2p.dtype.itemsize
                        + Bp * Hp * act_bytes),
    )

    out_padded = pl.pallas_call(
        mlp2_kernel,
        out_shape=jax.ShapeDtypeStruct((Bp, Hp), dt),
        grid_spec=pltpu.PrefetchScalarGridSpec(
            num_scalar_prefetch=0,
            grid=(Bp // TM, n_k),                          # reduction axis last
            in_specs=[
                pl.BlockSpec((TM, Hp), lambda i, k: (i, 0)),   # x tile
                pl.BlockSpec((Hp, TK), lambda i, k: (0, k)),   # W1[:, k-slice]
                pl.BlockSpec((1, TK), lambda i, k: (0, k)),    # b1[k-slice]
                pl.BlockSpec((TK, Hp), lambda i, k: (k, 0)),   # W2[k-slice, :]
                pl.BlockSpec((1, Hp), lambda i, k: (0, 0)),    # b2
            ],
            out_specs=pl.BlockSpec((TM, Hp), lambda i, k: (i, 0)),
            scratch_shapes=[pltpu.VMEM((TM, Hp), jnp.float32)],
        ),
        compiler_params=pltpu.CompilerParams(
            dimension_semantics=("parallel", "arbitrary"),
            vmem_limit_bytes=vmem_limit,
        ),
        cost_estimate=cost,
    )(xp, w1p, b1p, w2p, b2p)

    # Slice off zero-padded batch rows and hidden lanes.
    return out_padded[:B, :H]


def _make_params(key, H):
    """Deterministic init mimicking nn.Linear's uniform(-1/sqrt(H), 1/sqrt(H));
    PyTorch stores weights as (out, in) -> transpose to (in, out)."""
    k1w, k1b, k2w, k2b = jax.random.split(key, 4)
    bound = 1.0 / jnp.sqrt(jnp.float32(H))
    w1_pt = jax.random.uniform(k1w, (H, H), jnp.float32, -bound, bound)
    b1 = jax.random.uniform(k1b, (H,), jnp.float32, -bound, bound)
    w2_pt = jax.random.uniform(k2w, (H, H), jnp.float32, -bound, bound)
    b2 = jax.random.uniform(k2b, (H,), jnp.float32, -bound, bound)
    return w1_pt.T, b1, w2_pt.T, b2


if __name__ == "__main__":
    key = jax.random.PRNGKey(0)

    # --- case 1: module's toy shape (B=8, hidden=32) -------------------------
    B, H = 8, 32
    kx, kp = jax.random.split(key)
    w1, b1, w2, b2 = _make_params(kp, H)
    x = jax.random.normal(kx, (B, H), jnp.float32)
    params = prepare_pliswork_params(w1, b1, w2, b2)

    ref = (x @ w1 + b1) @ w2 + b2
    out_pallas = jax.block_until_ready(
        pliswork_forward(x, params, force_pallas=True))
    out_fast = jax.block_until_ready(pliswork_forward(x, params))
    assert out_pallas.shape == (B, H)
    assert jnp.allclose(out_pallas, ref, atol=2e-5, rtol=2e-5), "pallas mismatch"
    assert jnp.allclose(out_fast, ref, atol=2e-5, rtol=2e-5), "fast-path mismatch"

    # --- case 2: exercise the multi-step reduction grid (Hp=256 -> 2 k-steps) -
    B2, H2 = 16, 160
    kx2, kp2 = jax.random.split(kp)
    w1b_, b1b_, w2b_, b2b_ = _make_params(kp2, H2)
    x2 = jax.random.normal(kx2, (B2, H2), jnp.float32)
    params2 = prepare_pliswork_params(w1b_, b1b_, w2b_, b2b_)

    ref2 = (x2 @ w1b_ + b1b_) @ w2b_ + b2b_
    out2 = jax.block_until_ready(
        pliswork_forward(x2, params2, force_pallas=True))
    assert out2.shape == (B2, H2)
    assert jnp.allclose(out2, ref2, atol=2e-5, rtol=2e-5), "reduction-grid mismatch"

    print("KERNEL_OK")
</pallas_src>

<mosaic_0001>
module attributes {stable_mosaic.version = 11 : i64} {
  func.func @mlp2_kernel(%arg0: i32, %arg1: i32, %arg2: memref<8x128xf32, #tpu.memory_space<vmem>>, %arg3: memref<128x128xf32, #tpu.memory_space<vmem>>, %arg4: memref<1x128xf32, #tpu.memory_space<vmem>>, %arg5: memref<128x128xf32, #tpu.memory_space<vmem>>, %arg6: memref<1x128xf32, #tpu.memory_space<vmem>>, %arg7: memref<8x128xf32, #tpu.memory_space<vmem>>, %arg8: memref<8x128xf32, #tpu.memory_space<vmem>>) attributes {dimension_semantics = [#tpu.dimension_semantics<parallel>, #tpu.dimension_semantics<arbitrary>], iteration_bounds = array<i64: 1, 1>, scalar_prefetch = 0 : i64, scratch_operands = 1 : i64, tpu.core_type = #tpu.core_type<tc>, window_params = [{transform_indices = @transform_0, window_bounds = array<i64: 8, 128>}, {transform_indices = @transform_1, window_bounds = array<i64: 128, 128>}, {transform_indices = @transform_2, window_bounds = array<i64: 1, 128>}, {transform_indices = @transform_3, window_bounds = array<i64: 128, 128>}, {pipeline_mode = #tpu.pipeline_mode<synchronous>, transform_indices = @transform_4, window_bounds = array<i64: 1, 128>}, {transform_indices = @transform_5, window_bounds = array<i64: 8, 128>}]} {
    %c0_i32 = arith.constant 0 : i32
    %0 = arith.cmpi eq, %arg1, %c0_i32 : i32
    %1 = arith.extui %0 : i1 to i32
    %c0_i32_0 = arith.constant 0 : i32
    %2 = arith.cmpi ne, %1, %c0_i32_0 : i32
    scf.if %2 {
      %cst_15 = arith.constant 0.000000e+00 : f32
      %17 = vector.broadcast %cst_15 : f32 to vector<8x128xf32>
      %c0_16 = arith.constant 0 : index
      %c0_17 = arith.constant 0 : index
      %18 = vector.load %arg8[%c0_16, %c0_17] : memref<8x128xf32, #tpu.memory_space<vmem>>, vector<8x128xf32>
      tpu.vector_store %arg8[%c0_16, %c0_17], %17 {strides = array<i32>} : memref<8x128xf32, #tpu.memory_space<vmem>>, vector<8x128xf32>,
    } else {
    }
    %c0 = arith.constant 0 : index
    %c0_1 = arith.constant 0 : index
    %3 = vector.load %arg2[%c0, %c0_1] : memref<8x128xf32, #tpu.memory_space<vmem>>, vector<8x128xf32>
    %c0_2 = arith.constant 0 : index
    %c0_3 = arith.constant 0 : index
    %4 = vector.load %arg3[%c0_2, %c0_3] : memref<128x128xf32, #tpu.memory_space<vmem>>, vector<128x128xf32>
    %cst = arith.constant dense<0.000000e+00> : vector<8x128xf32>
    %5 = tpu.matmul %3, %4, %cst {dimension_numbers = #tpu.dot_dimension_numbers<[1], [0], [0], [1], [0, 0, 1, 1], [], []>} : vector<8x128xf32>, vector<128x128xf32>, vector<8x128xf32> -> vector<8x128xf32>
    %c0_4 = arith.constant 0 : index
    %c0_5 = arith.constant 0 : index
    %6 = vector.load %arg4[%c0_4, %c0_5] : memref<1x128xf32, #tpu.memory_space<vmem>>, vector<1x128xf32>
    %7 = vector.broadcast %6 : vector<1x128xf32> to vector<8x128xf32>
    %8 = arith.addf %5, %7 : vector<8x128xf32>
    %c0_6 = arith.constant 0 : index
    %c0_7 = arith.constant 0 : index
    %9 = vector.load %arg8[%c0_6, %c0_7] : memref<8x128xf32, #tpu.memory_space<vmem>>, vector<8x128xf32>
    %c0_8 = arith.constant 0 : index
    %c0_9 = arith.constant 0 : index
    %10 = vector.load %arg5[%c0_8, %c0_9] : memref<128x128xf32, #tpu.memory_space<vmem>>, vector<128x128xf32>
    %cst_10 = arith.constant dense<0.000000e+00> : vector<8x128xf32>
    %11 = tpu.matmul %8, %10, %cst_10 {dimension_numbers = #tpu.dot_dimension_numbers<[1], [0], [0], [1], [0, 0, 1, 1], [], []>} : vector<8x128xf32>, vector<128x128xf32>, vector<8x128xf32> -> vector<8x128xf32>
    %12 = arith.addf %9, %11 : vector<8x128xf32>
    %c0_11 = arith.constant 0 : index
    %c0_12 = arith.constant 0 : index
    %13 = vector.load %arg8[%c0_11, %c0_12] : memref<8x128xf32, #tpu.memory_space<vmem>>, vector<8x128xf32>
    tpu.vector_store %arg8[%c0_11, %c0_12], %12 {strides = array<i32>} : memref<8x128xf32, #tpu.memory_space<vmem>>, vector<8x128xf32>,
    %c0_i32_13 = arith.constant 0 : i32
    %14 = arith.cmpi eq, %arg1, %c0_i32_13 : i32
    %15 = arith.extui %14 : i1 to i32
    %c0_i32_14 = arith.constant 0 : i32
    %16 = arith.cmpi ne, %15, %c0_i32_14 : i32
    scf.if %16 {
      %c0_15 = arith.constant 0 : index
      %c0_16 = arith.constant 0 : index
      %17 = vector.load %arg8[%c0_15, %c0_16] : memref<8x128xf32, #tpu.memory_space<vmem>>, vector<8x128xf32>
      %c0_17 = arith.constant 0 : index
      %c0_18 = arith.constant 0 : index
      %18 = vector.load %arg6[%c0_17, %c0_18] : memref<1x128xf32, #tpu.memory_space<vmem>>, vector<1x128xf32>
      %19 = vector.broadcast %18 : vector<1x128xf32> to vector<8x128xf32>
      %20 = arith.addf %17, %19 : vector<8x128xf32>
      %c0_19 = arith.constant 0 : index
      %c0_20 = arith.constant 0 : index
      %21 = vector.load %arg7[%c0_19, %c0_20] : memref<8x128xf32, #tpu.memory_space<vmem>>, vector<8x128xf32>
      tpu.vector_store %arg7[%c0_19, %c0_20], %20 {strides = array<i32>} : memref<8x128xf32, #tpu.memory_space<vmem>>, vector<8x128xf32>,
    } else {
    }
    return
  }
  func.func @transform_0(%arg0: i32, %arg1: i32) -> (i32, i32) {
    %c0_i32 = arith.constant 0 : i32
    %c0_i32_0 = arith.constant 0 : i32
    return %arg0, %c0_i32 : i32, i32
  }
  func.func @transform_1(%arg0: i32, %arg1: i32) -> (i32, i32) {
    %c0_i32 = arith.constant 0 : i32
    %c0_i32_0 = arith.constant 0 : i32
    return %c0_i32, %arg1 : i32, i32
  }
  func.func @transform_2(%arg0: i32, %arg1: i32) -> (i32, i32) {
    %c0_i32 = arith.constant 0 : i32
    %c0_i32_0 = arith.constant 0 : i32
    return %c0_i32, %arg1 : i32, i32
  }
  func.func @transform_3(%arg0: i32, %arg1: i32) -> (i32, i32) {
    %c0_i32 = arith.constant 0 : i32
    %c0_i32_0 = arith.constant 0 : i32
    return %arg1, %c0_i32 : i32, i32
  }
  func.func @transform_4(%arg0: i32, %arg1: i32) -> (i32, i32) {
    %c0_i32 = arith.constant 0 : i32
    %c0_i32_0 = arith.constant 0 : i32
    %c0_i32_1 = arith.constant 0 : i32
    return %c0_i32, %c0_i32_0 : i32, i32
  }
  func.func @transform_5(%arg0: i32, %arg1: i32) -> (i32, i32) {
    %c0_i32 = arith.constant 0 : i32
    %c0_i32_0 = arith.constant 0 : i32
    return %arg0, %c0_i32 : i32, i32
  }
}

</mosaic_0001>

<llo_original>
// kernel: tpu_custom_call.1
$region0: #{tpu_custom_call.1}
  #allocation0 [shape = 'u32[]', space=smem, size = 0x4, offset = 0x4, fixed_abs, tag = 'smem constant byte address 0x4 - core index']
  #allocation1 [shape = 'u32[72,128]{1,0:T(1,128)}', space=vmem, size = 0x9000, scoped, tag = 'internal scratch']
  #allocation2 [shape = 'f32[8,128]{1,0:T(8,128)}', space=vmem, size = 0x1000, scoped, tag = 'scratch operand']
  %s0 = inlined_call_operand.hbm [shape: f32[8,128], index: 0, kind: input, shape index: {}]
  %s1 = inlined_call_operand.hbm [shape: f32[128,128], index: 1, kind: input, shape index: {}]
  %s2 = inlined_call_operand.vmem [shape: f32[1,128], index: 2, kind: input, shape index: {}]
  %s3 = inlined_call_operand.hbm [shape: f32[128,128], index: 3, kind: input, shape index: {}]
  %s4 = inlined_call_operand.vmem [shape: f32[1,128], index: 4, kind: input, shape index: {}]
  %s5 = inlined_call_operand.hbm [shape: f32[8,128], index: 5, kind: output, shape index: {}]
  %s6 = sld [smem:[#allocation0]]
  $region50: #{tpu_custom_call.1} parent=0
    _
  %s8 = ssub.s32 1, %s6
  %s9 = scalar_select 0, %s8, %s6
  $region1: #{tpu_custom_call.1} parent=0
    #allocation3 [shape = 'u8[4096]{0}', space=vmem, size = 0x1000, scoped, tag = 'input window, operand 0, single buffered']
    #allocation4 [shape = 's32[1]{0}', space=sflag, size = 0x4, scoped, tag = 'scoped memory for tpu_custom_call.1']
    #allocation5 [shape = 's32[1]{0}', space=sflag, size = 0x4, scoped, tag = 'scoped memory for tpu_custom_call.1']
    #allocation6 [shape = 'u8[65536]{0}', space=vmem, size = 0x10000, scoped, tag = 'input window, operand 1, single buffered']
    #allocation7 [shape = 's32[1]{0}', space=sflag, size = 0x4, scoped, tag = 'scoped memory for tpu_custom_call.1']
    #allocation8 [shape = 'u8[65536]{0}', space=vmem, size = 0x10000, scoped, tag = 'input window, operand 3, single buffered']
    #allocation9 [shape = 'u8[4096]{0}', space=vmem, size = 0x1000, scoped, tag = 'output window, operand 0, single buffered']
    %10 = vsyncpa [#allocation4], 0
    %11 = vsyncpa [#allocation7], 0
    %12 = vsyncpa [#allocation5], 0
    // Predicated region
    $region2: #{tpu_custom_call.1} parent=1 // pred_check
      _
    $region3: #{tpu_custom_call.1} parent=1 // pred_check_branch
      %14 = sbr.rel (0) target = $region5
    $region4: #{tpu_custom_call.1} parent=1 // pred_region
      %16 = vsyncadd [#allocation4], 0
      %s18 = sshll.u32 %s0, 4
      %s19 = int_to_ptr.hbm [resolvable:$true] %s18
      %s20 = sshll.u32 [#allocation3], 4
      %s21 = int_to_ptr.vmem [resolvable:$true] %s20
      %23 = dma.hbm_to_vmem [thread:$0]  %s19, 128, %s21, [#allocation4]
    $region5: #{tpu_custom_call.1} parent=1 // pred_fallthru
      _
    // Predicated region
    $region6: #{tpu_custom_call.1} parent=1 // pred_check
      _
    $region7: #{tpu_custom_call.1} parent=1 // pred_check_branch
      %25 = sbr.rel (0) target = $region9
    $region8: #{tpu_custom_call.1} parent=1 // pred_region
      %27 = vsyncadd [#allocation7], 0
      %s28 = sshll.u32 %s1, 4
      %s29 = int_to_ptr.hbm [resolvable:$true] %s28
      %s30 = sshll.u32 [#allocation6], 4
      %s31 = int_to_ptr.vmem [resolvable:$true] %s30
      %36 = dma.hbm_to_vmem [thread:$0]  %s29, 2048, %s31, [#allocation7], 128, 128, 8
    $region9: #{tpu_custom_call.1} parent=1 // pred_fallthru
      _
    // Predicated region
    $region10: #{tpu_custom_call.1} parent=1 // pred_check
      _
    $region11: #{tpu_custom_call.1} parent=1 // pred_check_branch
      %38 = sbr.rel (0) target = $region13
    $region12: #{tpu_custom_call.1} parent=1 // pred_region
      _
    $region13: #{tpu_custom_call.1} parent=1 // pred_fallthru
      _
    // Predicated region
    $region14: #{tpu_custom_call.1} parent=1 // pred_check
      _
    $region15: #{tpu_custom_call.1} parent=1 // pred_check_branch
      %40 = sbr.rel (0) target = $region17
    $region16: #{tpu_custom_call.1} parent=1 // pred_region
      %42 = vsyncadd [#allocation7], 0
      %s43 = sshll.u32 %s3, 4
      %s44 = int_to_ptr.hbm [resolvable:$true] %s43
      %s45 = sshll.u32 [#allocation8], 4
      %s46 = int_to_ptr.vmem [resolvable:$true] %s45
      %51 = dma.hbm_to_vmem [thread:$0]  %s44, 2048, %s46, [#allocation7], 128, 128, 8
    $region17: #{tpu_custom_call.1} parent=1 // pred_fallthru
      _
    // Predicated region
    $region18: #{tpu_custom_call.1} parent=1 // pred_check
      _
    $region19: #{tpu_custom_call.1} parent=1 // pred_check_branch
      %53 = sbr.rel (0) target = $region21
    $region20: #{tpu_custom_call.1} parent=1 // pred_region
      _
    $region21: #{tpu_custom_call.1} parent=1 // pred_fallthru
      _
    // Predicated region
    $region22: #{tpu_custom_call.1} parent=1 // pred_check
      _
    $region23: #{tpu_custom_call.1} parent=1 // pred_check_branch
      %55 = sbr.rel (0) target = $region25
    $region24: #{tpu_custom_call.1} parent=1 // pred_region
      %57 = dma.done [#allocation4], 128
    $region25: #{tpu_custom_call.1} parent=1 // pred_fallthru
      _
    // Predicated region
    $region26: #{tpu_custom_call.1} parent=1 // pred_check
      _
    $region27: #{tpu_custom_call.1} parent=1 // pred_check_branch
      %59 = sbr.rel (0) target = $region29
    $region28: #{tpu_custom_call.1} parent=1 // pred_region
      %61 = dma.done [#allocation7], 2048
    $region29: #{tpu_custom_call.1} parent=1 // pred_fallthru
      _
    // Predicated region
    $region30: #{tpu_custom_call.1} parent=1 // pred_check
      _
    $region31: #{tpu_custom_call.1} parent=1 // pred_check_branch
      %63 = sbr.rel (0) target = $region33
    $region32: #{tpu_custom_call.1} parent=1 // pred_region
      %65 = dma.done [#allocation7], 2048
    $region33: #{tpu_custom_call.1} parent=1 // pred_fallthru
      _
    %p66 = scmp.eq.s32.totalorder 0, 0
    // Predicated region
    $region34: #{tpu_custom_call.1} parent=1 // pred_check
      %p67 = pneg %p66
    $region35: #{tpu_custom_call.1} parent=1 // pred_check_branch
      %69 = sbr.rel (%p67) target = $region37
    $region36: #{tpu_custom_call.1} parent=1 // pred_region
      %70 = vst [vmem:[#allocation2] sm:$0xff] 0.0
    $region37: #{tpu_custom_call.1} parent=1 // pred_fallthru
      _
    %v71 = vld [vmem:[#allocation3] sm:$0xff]
    %v72 = vld [vmem:[#allocation6] sm:$0xff]
    %v73 = vld [vmem:[#allocation6 + $0x8] sm:$0xff]
    %v74 = vld [vmem:[#allocation6 + $0x10] sm:$0xff]
    %v75 = vld [vmem:[#allocation6 + $0x18] sm:$0xff]
    %v76 = vld [vmem:[#allocation6 + $0x20] sm:$0xff]
    %v77 = vld [vmem:[#allocation6 + $0x28] sm:$0xff]
    %v78 = vld [vmem:[#allocation6 + $0x30] sm:$0xff]
    %v79 = vld [vmem:[#allocation6 + $0x38] sm:$0xff]
    %v80 = vld [vmem:[#allocation6 + $0x40] sm:$0xff]
    %v81 = vld [vmem:[#allocation6 + $0x48] sm:$0xff]
    %v82 = vld [vmem:[#allocation6 + $0x50] sm:$0xff]
    %v83 = vld [vmem:[#allocation6 + $0x58] sm:$0xff]
    %v84 = vld [vmem:[#allocation6 + $0x60] sm:$0xff]
    %v85 = vld [vmem:[#allocation6 + $0x68] sm:$0xff]
    %v86 = vld [vmem:[#allocation6 + $0x70] sm:$0xff]
    %v87 = vld [vmem:[#allocation6 + $0x78] sm:$0xff]
    %v88 = vld [vmem:[%s2] sm:$0x1]
    %v90 = vperm.slane %v88, 0
    %92 = vmatpush.msra.mxu0 %v87
    %93 = vmatpush.msra.mxu0 %v86
    %94 = vmatpush.msra.mxu0 %v85
    %95 = vmatpush.msra.mxu0 %v84
    %96 = vmatpush.msra.mxu0 %v83
    %97 = vmatpush.msra.mxu0 %v82
    %98 = vmatpush.msra.mxu0 %v81
    %99 = vmatpush.msra.mxu0 %v80
    %100 = vmatpush.msra.mxu0 %v79
    %101 = vmatpush.msra.mxu0 %v78
    %102 = vmatpush.msra.mxu0 %v77
    %103 = vmatpush.msra.mxu0 %v76
    %104 = vmatpush.msra.mxu0 %v75
    %105 = vmatpush.msra.mxu0 %v74
    %106 = vmatpush.msra.mxu0 %v73
    %107 = vmatpush.msra.mxu0 %v72
    %108 = vmatmul.f32.gmra.mxu0 %v71
    %v109 = vpop.f32.mrf.mxu0
    %v110 = vadd.f32 %v90, %v109
    %111 = vdwg.mxu0
    %v112 = vld [vmem:[#allocation2] sm:$0xff]
    %v113 = vld [vmem:[#allocation8] sm:$0xff]
    %v114 = vld [vmem:[#allocation8 + $0x8] sm:$0xff]
    %v115 = vld [vmem:[#allocation8 + $0x10] sm:$0xff]
    %v116 = vld [vmem:[#allocation8 + $0x18] sm:$0xff]
    %v117 = vld [vmem:[#allocation8 + $0x20] sm:$0xff]
    %v118 = vld [vmem:[#allocation8 + $0x28] sm:$0xff]
    %v119 = vld [vmem:[#allocation8 + $0x30] sm:$0xff]
    %v120 = vld [vmem:[#allocation8 + $0x38] sm:$0xff]
    %v121 = vld [vmem:[#allocation8 + $0x40] sm:$0xff]
    %v122 = vld [vmem:[#allocation8 + $0x48] sm:$0xff]
    %v123 = vld [vmem:[#allocation8 + $0x50] sm:$0xff]
    %v124 = vld [vmem:[#allocation8 + $0x58] sm:$0xff]
    %v125 = vld [vmem:[#allocation8 + $0x60] sm:$0xff]
    %v126 = vld [vmem:[#allocation8 + $0x68] sm:$0xff]
    %v127 = vld [vmem:[#allocation8 + $0x70] sm:$0xff]
    %v128 = vld [vmem:[#allocation8 + $0x78] sm:$0xff]
    %129 = vmatpush.msra.mxu0 %v128
    %130 = vmatpush.msra.mxu0 %v127
    %131 = vmatpush.msra.mxu0 %v126
    %132 = vmatpush.msra.mxu0 %v125
    %133 = vmatpush.msra.mxu0 %v124
    %134 = vmatpush.msra.mxu0 %v123
    %135 = vmatpush.msra.mxu0 %v122
    %136 = vmatpush.msra.mxu0 %v121
    %137 = vmatpush.msra.mxu0 %v120
    %138 = vmatpush.msra.mxu0 %v119
    %139 = vmatpush.msra.mxu0 %v118
    %140 = vmatpush.msra.mxu0 %v117
    %141 = vmatpush.msra.mxu0 %v116
    %142 = vmatpush.msra.mxu0 %v115
    %143 = vmatpush.msra.mxu0 %v114
    %144 = vmatpush.msra.mxu0 %v113
    %145 = vmatmul.f32.gmra.mxu0 %v110
    %v146 = vpop.f32.mrf.mxu0
    %v147 = vadd.f32 0.0, %v146
    %148 = vdwg.mxu0
    %v149 = vadd.f32 %v112, %v147
    %150 = vst [vmem:[#allocation2] sm:$0xff] %v149
    // Predicated region
    $region38: #{tpu_custom_call.1} parent=1 // pred_check
      %p151 = pneg %p66
    $region39: #{tpu_custom_call.1} parent=1 // pred_check_branch
      %153 = sbr.rel (%p151) target = $region41
    $region40: #{tpu_custom_call.1} parent=1 // pred_region
      %v154 = vld [vmem:[#allocation2] sm:$0xff]
      %v155 = vld [vmem:[%s4] sm:$0x1]
      %v157 = vperm.slane %v155, 0
      %v159 = vadd.f32 %v154, %v157
      %160 = vst [vmem:[#allocation9] sm:$0xff] %v159
    $region41: #{tpu_custom_call.1} parent=1 // pred_fallthru
      _
    // Predicated region
    $region42: #{tpu_custom_call.1} parent=1 // pred_check
      _
    $region43: #{tpu_custom_call.1} parent=1 // pred_check_branch
      %162 = sbr.rel (0) target = $region45
    $region44: #{tpu_custom_call.1} parent=1 // pred_region
      %164 = vsyncadd [#allocation5], 0
      %s166 = sshll.u32 [#allocation9], 4
      %s167 = int_to_ptr.vmem [resolvable:$true] %s166
      %s168 = sshll.u32 %s5, 4
      %s169 = int_to_ptr.hbm [resolvable:$true] %s168
      %171 = dma.vmem_to_hbm [thread:$0]  %s167, 128, %s169, [#allocation5]
    $region45: #{tpu_custom_call.1} parent=1 // pred_fallthru
      _
    // Predicated region
    $region46: #{tpu_custom_call.1} parent=1 // pred_check
      _
    $region47: #{tpu_custom_call.1} parent=1 // pred_check_branch
      %173 = sbr.rel (0) target = $region49
    $region48: #{tpu_custom_call.1} parent=1 // pred_region
      %175 = dma.done [#allocation5], 128
    $region49: #{tpu_custom_call.1} parent=1 // pred_fallthru
      _
    %176 = vsyncpa [#allocation4], 1
    %177 = vsyncpa [#allocation7], 1
    %178 = vsyncpa [#allocation5], 1

</llo_original>
